<compile_context>
chip_gen: v7x
topology: tpu7x:2x2x1
jax: 0.10.0
libtpu: 0.0.40
codegen_flags: <defaults>
</compile_context>

<pallas_src>
from functools import partial

import jax
import jax.numpy as jnp
from jax.experimental import pallas as pl
from jax.experimental.pallas import tpu as pltpu

H = 10       # true hidden width
H_SUB = 16   # hidden width padded to a sublane multiple (10 -> 16)


def _mlp_kernel(x_ref, w1_ref, b1_ref, w2_ref, b2_ref, w3_ref, b3_ref, o_ref):
    # x_ref : (2, TB)   batch on lanes
    # w1    : (16, 2)   b1 : (16, 1)        (PyTorch [out, in] layout, zero padded)
    # w2    : (16, 16)  b2 : (16, 1)
    # w3    : (16, 1)   b3 : (1,) in SMEM
    # o_ref : (1, TB)
    x0 = x_ref[0:1, :]                      # (1, TB) rows -> cheap sublane broadcasts
    x1 = x_ref[1:2, :]

    # layer 1 (K=2): two broadcast FMAs; weight columns are O(1) lane broadcasts.
    h = w1_ref[:, 0:1] * x0 + w1_ref[:, 1:2] * x1 + b1_ref[...]     # (16, TB)
    h = jnp.maximum(h, 0.0)

    # layer 2 (K=10): unrolled VPU FMAs over (16, TB); rows of h are sublane
    # broadcasts, w2 columns are O(1) lane broadcasts.  No MXU needed at K=10.
    acc = w2_ref[:, 0:1] * h[0:1, :]
    for j in range(1, H):
        acc = acc + w2_ref[:, j:j + 1] * h[j:j + 1, :]
    h2 = jnp.maximum(acc + b2_ref[...], 0.0)                        # (16, TB)

    # layer 3 (->1): weighted sublane reduction -> lane-dense (1, TB) store.
    o_ref[...] = jnp.sum(h2 * w3_ref[...], axis=0, keepdims=True) + b3_ref[0]


def _round_up(n, m):
    return ((n + m - 1) // m) * m


def _pad_to(a, shape):
    return jnp.pad(a, [(0, t - s) for s, t in zip(a.shape, shape)])


def prepare_params(params):
    """One-time preprocessing: minimal zero padding, hidden on sublanes."""
    f32 = lambda a: jnp.asarray(a, jnp.float32)
    w1_p = _pad_to(f32(params["w1"]), (H_SUB, 2))                    # (16, 2)  [out, in]
    b1_p = _pad_to(f32(params["b1"]).reshape(-1, 1), (H_SUB, 1))     # (16, 1)
    w2_p = _pad_to(f32(params["w2"]), (H_SUB, H_SUB))                # (16, 16) [out, in]
    b2_p = _pad_to(f32(params["b2"]).reshape(-1, 1), (H_SUB, 1))     # (16, 1)
    w3_p = _pad_to(f32(params["w3"]).reshape(-1, 1), (H_SUB, 1))     # (16, 1)  over hidden
    b3_p = f32(params["b3"]).reshape(1,)                             # (1,) scalar -> SMEM
    return (w1_p, b1_p, w2_p, b2_p, w3_p, b3_p)


@partial(jax.jit, static_argnames=("tb",))
def circle_model_v2_forward(x, prepared, tb=8192):
    """x: (B, 2). Returns (B, 1) float32, same semantics as the torch forward."""
    w1_p, b1_p, w2_p, b2_p, w3_p, b3_p = prepared
    B = x.shape[0]
    if x.dtype != jnp.float32:
        x = x.astype(jnp.float32)

    # Lane-aligned batch tile.  tb=8192 -> ~3-4 MiB/step VMEM (x/out pipeline
    # buffers + (16,TB) activations + tiny resident weights).  Keep >=2 grid
    # steps whenever the batch allows so v7x can shard the parallel axis
    # across both of its TensorCores.
    TB = min(tb, _round_up(B, 128))
    if B > 256 and _round_up(B, TB) == TB:        # would otherwise be a 1-step grid
        TB = _round_up(pl.cdiv(B, 2), 128)
    B_pad = _round_up(B, TB)

    # Batch-on-lanes relayout: (B, 2) -> (2, B_pad).  Pad+transpose fuse into a
    # single small XLA layout pass under jit; the kernel then streams fully
    # lane-dense 128-lane rows for both its input and its output.
    x_t = jnp.pad(x, ((0, B_pad - B), (0, 0))).T                     # (2, B_pad)

    const = lambda shape: pl.BlockSpec(shape, lambda i: (0, 0))      # resident weights

    out = pl.pallas_call(
        _mlp_kernel,
        out_shape=jax.ShapeDtypeStruct((1, B_pad), jnp.float32),
        grid=(B_pad // TB,),
        in_specs=[
            pl.BlockSpec((2, TB), lambda i: (0, i)),                 # x tile, lane-dense
            const((H_SUB, 2)), const((H_SUB, 1)),                    # w1, b1
            const((H_SUB, H_SUB)), const((H_SUB, 1)),                # w2, b2
            const((H_SUB, 1)),                                       # w3
            pl.BlockSpec(memory_space=pltpu.MemorySpace.SMEM),       # b3 scalar
        ],
        out_specs=pl.BlockSpec((1, TB), lambda i: (0, i)),           # lane-dense store
        compiler_params=pltpu.CompilerParams(
            dimension_semantics=("parallel",),                       # batch axis
        ),
    )(x_t, w1_p, b1_p, w2_p, b2_p, w3_p, b3_p)

    return out[0, :B].reshape(B, 1)    # free bitwise reshape back to (B, 1)


def init_params(key):
    """Deterministic init with PyTorch nn.Linear shapes: weight (out, in), bias (out,)."""
    def linear(k, fan_in, fan_out):
        kw, kb = jax.random.split(k)
        bound = 1.0 / jnp.sqrt(fan_in)
        w = jax.random.uniform(kw, (fan_out, fan_in), jnp.float32, -bound, bound)
        b = jax.random.uniform(kb, (fan_out,), jnp.float32, -bound, bound)
        return w, b

    k1, k2, k3 = jax.random.split(key, 3)
    w1, b1 = linear(k1, 2, 10)
    w2, b2 = linear(k2, 10, 10)
    w3, b3 = linear(k3, 10, 1)
    return {"w1": w1, "b1": b1, "w2": w2, "b2": b2, "w3": w3, "b3": b3}


def _reference(x, p):
    h = jnp.maximum(x @ p["w1"].T + p["b1"], 0.0)
    h = jnp.maximum(h @ p["w2"].T + p["b2"], 0.0)
    return h @ p["w3"].T + p["b3"]


if __name__ == "__main__":
    key = jax.random.PRNGKey(0)
    kx, kp = jax.random.split(key)

    B = 512                                   # small, but exercises a 2-step grid
    x = jax.random.normal(kx, (B, 2), jnp.float32)
    params = init_params(kp)
    prepared = prepare_params(params)         # one-time, hoisted out of forward

    out = jax.block_until_ready(circle_model_v2_forward(x, prepared))
    ref = _reference(x, params)
    assert out.shape == (B, 1), out.shape
    assert jnp.allclose(out, ref, atol=1e-5, rtol=1e-5), float(jnp.max(jnp.abs(out - ref)))

    # tiny, non-tile-aligned batch (single-step path)
    x2 = jax.random.normal(jax.random.PRNGKey(1), (9, 2), jnp.float32)
    out2 = jax.block_until_ready(circle_model_v2_forward(x2, prepared))
    assert out2.shape == (9, 1)
    assert jnp.allclose(out2, _reference(x2, params), atol=1e-5, rtol=1e-5)

    print("KERNEL_OK")
</pallas_src>

<mosaic_0001>
module attributes {stable_mosaic.version = 11 : i64} {
  func.func @_mlp_kernel(%arg0: i32, %arg1: memref<2x256xf32, #tpu.memory_space<vmem>>, %arg2: memref<16x2xf32, #tpu.memory_space<vmem>>, %arg3: memref<16x1xf32, #tpu.memory_space<vmem>>, %arg4: memref<16x16xf32, #tpu.memory_space<vmem>>, %arg5: memref<16x1xf32, #tpu.memory_space<vmem>>, %arg6: memref<16x1xf32, #tpu.memory_space<vmem>>, %arg7: memref<1xf32, #tpu.memory_space<smem>>, %arg8: memref<1x256xf32, #tpu.memory_space<vmem>>) attributes {dimension_semantics = [#tpu.dimension_semantics<parallel>], iteration_bounds = array<i64: 2>, scalar_prefetch = 0 : i64, scratch_operands = 0 : i64, tpu.core_type = #tpu.core_type<tc>, window_params = [{transform_indices = @transform_0, window_bounds = array<i64: 2, 256>}, {pipeline_mode = #tpu.pipeline_mode<synchronous>, transform_indices = @transform_1, window_bounds = array<i64: 16, 2>}, {pipeline_mode = #tpu.pipeline_mode<synchronous>, transform_indices = @transform_2, window_bounds = array<i64: 16, 1>}, {pipeline_mode = #tpu.pipeline_mode<synchronous>, transform_indices = @transform_3, window_bounds = array<i64: 16, 16>}, {pipeline_mode = #tpu.pipeline_mode<synchronous>, transform_indices = @transform_4, window_bounds = array<i64: 16, 1>}, {pipeline_mode = #tpu.pipeline_mode<synchronous>, transform_indices = @transform_5, window_bounds = array<i64: 16, 1>}, {transform_indices = @transform_6, window_bounds = array<i64: 1>}, {transform_indices = @transform_7, window_bounds = array<i64: 1, 256>}]} {
    %c0 = arith.constant 0 : index
    %c0_0 = arith.constant 0 : index
    %0 = vector.load %arg1[%c0, %c0_0] : memref<2x256xf32, #tpu.memory_space<vmem>>, vector<1x256xf32>
    %c1 = arith.constant 1 : index
    %c0_1 = arith.constant 0 : index
    %1 = vector.load %arg1[%c1, %c0_1] : memref<2x256xf32, #tpu.memory_space<vmem>>, vector<1x256xf32>
    %c0_2 = arith.constant 0 : index
    %c0_3 = arith.constant 0 : index
    %2 = vector.load %arg2[%c0_2, %c0_3] : memref<16x2xf32, #tpu.memory_space<vmem>>, vector<16x1xf32>
    %3 = vector.broadcast %2 : vector<16x1xf32> to vector<16x256xf32>
    %4 = vector.broadcast %0 : vector<1x256xf32> to vector<16x256xf32>
    %5 = arith.mulf %3, %4 : vector<16x256xf32>
    %c0_4 = arith.constant 0 : index
    %c1_5 = arith.constant 1 : index
    %6 = vector.load %arg2[%c0_4, %c1_5] : memref<16x2xf32, #tpu.memory_space<vmem>>, vector<16x1xf32>
    %7 = vector.broadcast %6 : vector<16x1xf32> to vector<16x256xf32>
    %8 = vector.broadcast %1 : vector<1x256xf32> to vector<16x256xf32>
    %9 = arith.mulf %7, %8 : vector<16x256xf32>
    %10 = arith.addf %5, %9 : vector<16x256xf32>
    %c0_6 = arith.constant 0 : index
    %c0_7 = arith.constant 0 : index
    %11 = vector.load %arg3[%c0_6, %c0_7] : memref<16x1xf32, #tpu.memory_space<vmem>>, vector<16x1xf32>
    %12 = vector.broadcast %11 : vector<16x1xf32> to vector<16x256xf32>
    %13 = arith.addf %10, %12 : vector<16x256xf32>
    %cst = arith.constant 0.000000e+00 : f32
    %14 = vector.broadcast %cst : f32 to vector<16x256xf32>
    %15 = arith.maximumf %13, %14 : vector<16x256xf32>
    %c0_8 = arith.constant 0 : index
    %c0_9 = arith.constant 0 : index
    %16 = vector.load %arg4[%c0_8, %c0_9] : memref<16x16xf32, #tpu.memory_space<vmem>>, vector<16x1xf32>
    %17 = vector.extract_strided_slice %15 {offsets = [0, 0], sizes = [1, 256], strides = [1, 1]} : vector<16x256xf32> to vector<1x256xf32>
    %18 = vector.broadcast %16 : vector<16x1xf32> to vector<16x256xf32>
    %19 = vector.broadcast %17 : vector<1x256xf32> to vector<16x256xf32>
    %20 = arith.mulf %18, %19 : vector<16x256xf32>
    %c0_10 = arith.constant 0 : index
    %c1_11 = arith.constant 1 : index
    %21 = vector.load %arg4[%c0_10, %c1_11] : memref<16x16xf32, #tpu.memory_space<vmem>>, vector<16x1xf32>
    %22 = vector.extract_strided_slice %15 {offsets = [1, 0], sizes = [1, 256], strides = [1, 1]} : vector<16x256xf32> to vector<1x256xf32>
    %23 = vector.broadcast %21 : vector<16x1xf32> to vector<16x256xf32>
    %24 = vector.broadcast %22 : vector<1x256xf32> to vector<16x256xf32>
    %25 = arith.mulf %23, %24 : vector<16x256xf32>
    %26 = arith.addf %20, %25 : vector<16x256xf32>
    %c0_12 = arith.constant 0 : index
    %c2 = arith.constant 2 : index
    %27 = vector.load %arg4[%c0_12, %c2] : memref<16x16xf32, #tpu.memory_space<vmem>>, vector<16x1xf32>
    %28 = vector.extract_strided_slice %15 {offsets = [2, 0], sizes = [1, 256], strides = [1, 1]} : vector<16x256xf32> to vector<1x256xf32>
    %29 = vector.broadcast %27 : vector<16x1xf32> to vector<16x256xf32>
    %30 = vector.broadcast %28 : vector<1x256xf32> to vector<16x256xf32>
    %31 = arith.mulf %29, %30 : vector<16x256xf32>
    %32 = arith.addf %26, %31 : vector<16x256xf32>
    %c0_13 = arith.constant 0 : index
    %c3 = arith.constant 3 : index
    %33 = vector.load %arg4[%c0_13, %c3] : memref<16x16xf32, #tpu.memory_space<vmem>>, vector<16x1xf32>
    %34 = vector.extract_strided_slice %15 {offsets = [3, 0], sizes = [1, 256], strides = [1, 1]} : vector<16x256xf32> to vector<1x256xf32>
    %35 = vector.broadcast %33 : vector<16x1xf32> to vector<16x256xf32>
    %36 = vector.broadcast %34 : vector<1x256xf32> to vector<16x256xf32>
    %37 = arith.mulf %35, %36 : vector<16x256xf32>
    %38 = arith.addf %32, %37 : vector<16x256xf32>
    %c0_14 = arith.constant 0 : index
    %c4 = arith.constant 4 : index
    %39 = vector.load %arg4[%c0_14, %c4] : memref<16x16xf32, #tpu.memory_space<vmem>>, vector<16x1xf32>
    %40 = vector.extract_strided_slice %15 {offsets = [4, 0], sizes = [1, 256], strides = [1, 1]} : vector<16x256xf32> to vector<1x256xf32>
    %41 = vector.broadcast %39 : vector<16x1xf32> to vector<16x256xf32>
    %42 = vector.broadcast %40 : vector<1x256xf32> to vector<16x256xf32>
    %43 = arith.mulf %41, %42 : vector<16x256xf32>
    %44 = arith.addf %38, %43 : vector<16x256xf32>
    %c0_15 = arith.constant 0 : index
    %c5 = arith.constant 5 : index
    %45 = vector.load %arg4[%c0_15, %c5] : memref<16x16xf32, #tpu.memory_space<vmem>>, vector<16x1xf32>
    %46 = vector.extract_strided_slice %15 {offsets = [5, 0], sizes = [1, 256], strides = [1, 1]} : vector<16x256xf32> to vector<1x256xf32>
    %47 = vector.broadcast %45 : vector<16x1xf32> to vector<16x256xf32>
    %48 = vector.broadcast %46 : vector<1x256xf32> to vector<16x256xf32>
    %49 = arith.mulf %47, %48 : vector<16x256xf32>
    %50 = arith.addf %44, %49 : vector<16x256xf32>
    %c0_16 = arith.constant 0 : index
    %c6 = arith.constant 6 : index
    %51 = vector.load %arg4[%c0_16, %c6] : memref<16x16xf32, #tpu.memory_space<vmem>>, vector<16x1xf32>
    %52 = vector.extract_strided_slice %15 {offsets = [6, 0], sizes = [1, 256], strides = [1, 1]} : vector<16x256xf32> to vector<1x256xf32>
    %53 = vector.broadcast %51 : vector<16x1xf32> to vector<16x256xf32>
    %54 = vector.broadcast %52 : vector<1x256xf32> to vector<16x256xf32>
    %55 = arith.mulf %53, %54 : vector<16x256xf32>
    %56 = arith.addf %50, %55 : vector<16x256xf32>
    %c0_17 = arith.constant 0 : index
    %c7 = arith.constant 7 : index
    %57 = vector.load %arg4[%c0_17, %c7] : memref<16x16xf32, #tpu.memory_space<vmem>>, vector<16x1xf32>
    %58 = vector.extract_strided_slice %15 {offsets = [7, 0], sizes = [1, 256], strides = [1, 1]} : vector<16x256xf32> to vector<1x256xf32>
    %59 = vector.broadcast %57 : vector<16x1xf32> to vector<16x256xf32>
    %60 = vector.broadcast %58 : vector<1x256xf32> to vector<16x256xf32>
    %61 = arith.mulf %59, %60 : vector<16x256xf32>
    %62 = arith.addf %56, %61 : vector<16x256xf32>
    %c0_18 = arith.constant 0 : index
    %c8 = arith.constant 8 : index
    %63 = vector.load %arg4[%c0_18, %c8] : memref<16x16xf32, #tpu.memory_space<vmem>>, vector<16x1xf32>
    %64 = vector.extract_strided_slice %15 {offsets = [8, 0], sizes = [1, 256], strides = [1, 1]} : vector<16x256xf32> to vector<1x256xf32>
    %65 = vector.broadcast %63 : vector<16x1xf32> to vector<16x256xf32>
    %66 = vector.broadcast %64 : vector<1x256xf32> to vector<16x256xf32>
    %67 = arith.mulf %65, %66 : vector<16x256xf32>
    %68 = arith.addf %62, %67 : vector<16x256xf32>
    %c0_19 = arith.constant 0 : index
    %c9 = arith.constant 9 : index
    %69 = vector.load %arg4[%c0_19, %c9] : memref<16x16xf32, #tpu.memory_space<vmem>>, vector<16x1xf32>
    %70 = vector.extract_strided_slice %15 {offsets = [9, 0], sizes = [1, 256], strides = [1, 1]} : vector<16x256xf32> to vector<1x256xf32>
    %71 = vector.broadcast %69 : vector<16x1xf32> to vector<16x256xf32>
    %72 = vector.broadcast %70 : vector<1x256xf32> to vector<16x256xf32>
    %73 = arith.mulf %71, %72 : vector<16x256xf32>
    %74 = arith.addf %68, %73 : vector<16x256xf32>
    %c0_20 = arith.constant 0 : index
    %c0_21 = arith.constant 0 : index
    %75 = vector.load %arg5[%c0_20, %c0_21] : memref<16x1xf32, #tpu.memory_space<vmem>>, vector<16x1xf32>
    %76 = vector.broadcast %75 : vector<16x1xf32> to vector<16x256xf32>
    %77 = arith.addf %74, %76 : vector<16x256xf32>
    %cst_22 = arith.constant 0.000000e+00 : f32
    %78 = vector.broadcast %cst_22 : f32 to vector<16x256xf32>
    %79 = arith.maximumf %77, %78 : vector<16x256xf32>
    %c0_23 = arith.constant 0 : index
    %c0_24 = arith.constant 0 : index
    %80 = vector.load %arg6[%c0_23, %c0_24] : memref<16x1xf32, #tpu.memory_space<vmem>>, vector<16x1xf32>
    %81 = vector.broadcast %80 : vector<16x1xf32> to vector<16x256xf32>
    %82 = arith.mulf %79, %81 : vector<16x256xf32>
    %cst_25 = arith.constant dense<0.000000e+00> : vector<256xf32>
    %83 = vector.multi_reduction <add>, %82, %cst_25 [0] : vector<16x256xf32> to vector<256xf32>
    %84 = vector.shape_cast %83 : vector<256xf32> to vector<1x256xf32>
    %c0_26 = arith.constant 0 : index
    %85 = memref.load %arg7[%c0_26] : memref<1xf32, #tpu.memory_space<smem>>
    %86 = vector.broadcast %85 : f32 to vector<1x256xf32>
    %87 = arith.addf %84, %86 : vector<1x256xf32>
    %c0_27 = arith.constant 0 : index
    %c0_28 = arith.constant 0 : index
    %88 = vector.load %arg8[%c0_27, %c0_28] : memref<1x256xf32, #tpu.memory_space<vmem>>, vector<1x256xf32>
    tpu.vector_store %arg8[%c0_27, %c0_28], %87 {strides = array<i32>} : memref<1x256xf32, #tpu.memory_space<vmem>>, vector<1x256xf32>,
    return
  }
  func.func @transform_0(%arg0: i32) -> (i32, i32) {
    %c0_i32 = arith.constant 0 : i32
    %c0_i32_0 = arith.constant 0 : i32
    return %c0_i32, %arg0 : i32, i32
  }
  func.func @transform_1(%arg0: i32) -> (i32, i32) {
    %c0_i32 = arith.constant 0 : i32
    %c0_i32_0 = arith.constant 0 : i32
    %c0_i32_1 = arith.constant 0 : i32
    return %c0_i32, %c0_i32_0 : i32, i32
  }
  func.func @transform_2(%arg0: i32) -> (i32, i32) {
    %c0_i32 = arith.constant 0 : i32
    %c0_i32_0 = arith.constant 0 : i32
    %c0_i32_1 = arith.constant 0 : i32
    return %c0_i32, %c0_i32_0 : i32, i32
  }
  func.func @transform_3(%arg0: i32) -> (i32, i32) {
    %c0_i32 = arith.constant 0 : i32
    %c0_i32_0 = arith.constant 0 : i32
    %c0_i32_1 = arith.constant 0 : i32
    return %c0_i32, %c0_i32_0 : i32, i32
  }
  func.func @transform_4(%arg0: i32) -> (i32, i32) {
    %c0_i32 = arith.constant 0 : i32
    %c0_i32_0 = arith.constant 0 : i32
    %c0_i32_1 = arith.constant 0 : i32
    return %c0_i32, %c0_i32_0 : i32, i32
  }
  func.func @transform_5(%arg0: i32) -> (i32, i32) {
    %c0_i32 = arith.constant 0 : i32
    %c0_i32_0 = arith.constant 0 : i32
    %c0_i32_1 = arith.constant 0 : i32
    return %c0_i32, %c0_i32_0 : i32, i32
  }
  func.func @transform_6(%arg0: i32) -> i32 {
    %c0_i32 = arith.constant 0 : i32
    %c0_i32_0 = arith.constant 0 : i32
    return %c0_i32 : i32
  }
  func.func @transform_7(%arg0: i32) -> (i32, i32) {
    %c0_i32 = arith.constant 0 : i32
    %c0_i32_0 = arith.constant 0 : i32
    return %c0_i32, %arg0 : i32, i32
  }
}

</mosaic_0001>

<llo_original>
// kernel: circle_model_v2_forward.1
$region0: #{circle_model_v2_forward.1}
  #allocation0 [shape = 'u32[]', space=smem, size = 0x4, offset = 0x4, fixed_abs, tag = 'smem constant byte address 0x4 - core index']
  #allocation1 [shape = 'u32[144,128]{1,0:T(1,128)}', space=vmem, size = 0x12000, scoped, tag = 'internal scratch']
  #allocation2 [shape = 'f32[1]{0:T(128)S(6)}', space=smem, size = 0x200, scoped, tag = 'scoped memory for circle_model_v2_forward.1']
  %s0 = inlined_call_operand.vmem [shape: f32[2,512], index: 0, kind: input, shape index: {}]
  %s1 = inlined_call_operand.vmem [shape: f32[16,2], index: 1, kind: input, shape index: {}]
  %s2 = inlined_call_operand.vmem [shape: f32[16,1], index: 2, kind: input, shape index: {}]
  %s3 = inlined_call_operand.vmem [shape: f32[16,16], index: 3, kind: input, shape index: {}]
  %s4 = inlined_call_operand.vmem [shape: f32[16,1], index: 4, kind: input, shape index: {}]
  %s5 = inlined_call_operand.vmem [shape: f32[16,1], index: 5, kind: input, shape index: {}]
  %s6 = inlined_call_operand.<no memory space> [shape: f32[1], index: 6, kind: input, shape index: {}]
  %s7 = inlined_call_operand.hbm [shape: f32[1,512], index: 7, kind: output, shape index: {}]
  %s8 = sld [smem:[#allocation0]]
  $region61: #{circle_model_v2_forward.1} parent=0
    _
  %s10 = ssub.s32 1, %s8
  %s11 = scalar_select 0, %s10, %s8
  %12 = sst [smem:[#allocation2]] %s6
  $region1: #{circle_model_v2_forward.1} parent=0
    #allocation3 [shape = 'u8[2048]{0}', space=vmem, size = 0x800, scoped, tag = 'output window, operand 0']
    #allocation4 [shape = 's32[2]{0}', space=sflag, size = 0x8, scoped, tag = 'scoped memory for circle_model_v2_forward.1']
    %13 = vsyncpa [#allocation4], 0
    %s14 = scalar_lea.sflag [#allocation4], 1
    %15 = vsyncpa %s14, 0
    loop: start=0, step=1, limit=4
    $region2: #{circle_model_v2_forward.1} parent=1 // loop_pre_header
      _
    $region3: #{circle_model_v2_forward.1} parent=1 // loop_header
      %s17 = sphi 0, %s21
      %p18 = scmp.ge.s32.totalorder %s17, 4
      %s27 = sphi 0, %s29
      %s30 = sphi 0, %s27
      %s31 = sphi 0, %s30
      %s47 = sphi 0, %s31
      %s51 = sphi 0, %s51
      %s53 = sphi 0, %s51
      %s54 = sphi 0, %s53
      %s68 = sphi 0, %s54
      %s72 = sphi 0, %s72
      %s74 = sphi 0, %s72
      %s75 = sphi 0, %s74
      %s89 = sphi 0, %s75
      %s93 = sphi 0, %s93
      %s95 = sphi 0, %s93
      %s96 = sphi 0, %s95
      %s110 = sphi 0, %s96
      %s114 = sphi 0, %s114
      %s116 = sphi 0, %s114
      %s117 = sphi 0, %s116
      %s131 = sphi 0, %s117
      %s135 = sphi 0, %s135
      %s137 = sphi 0, %s135
      %s138 = sphi 0, %s137
      %s152 = sphi 0, %s138
      %s156 = sphi 0, %s156
      %s158 = sphi 0, %s156
      %s159 = sphi 0, %s158
      %s173 = sphi 0, %s159
      %s179 = sphi 0, %s181
      %s182 = sphi 0, %s179
      %s183 = sphi 0, %s182
      %s199 = sphi 0, %s183
    $region4: #{circle_model_v2_forward.1} parent=1 // loop_header_branch
      %20 = sbr.rel (%p18) target = $region8
    $region5: #{circle_model_v2_forward.1} parent=1 // loop_body
      %s22 = ssub.s32 %s17, 1
      %s23 = ssub.s32 %s17, 2
      %s24 = sadd.s32 %s17, 1
      %s25 = ssub.s32 %s17, %s24
      %p26 = scmp.eq.s32.totalorder %s25, 0
      %s28 = sadd.s32 %s27, 1
      %s29 = scalar_select %p26, %s27, %s28
      %p32 = pneg %p26
      %p33 = scmp.eq.s32.totalorder %s17, 1
      %p34 = por %p32, %p33
      %p35 = scmp.ne.s32.totalorder %s27, %s30
      %p36 = scmp.eq.s32.totalorder %s17, 0
      %p37 = por %p35, %p36
      %p38 = scmp.ne.s32.totalorder %s27, %s30
      %p39 = scmp.eq.s32.totalorder %s22, 1
      %p40 = por %p38, %p39
      %p41 = scmp.ne.s32.totalorder %s30, %s31
      %p42 = scmp.eq.s32.totalorder %s22, 0
      %p43 = por %p41, %p42
      %p44 = scmp.ne.s32.totalorder %s30, %s31
      %p45 = scmp.eq.s32.totalorder %s23, 1
      %p46 = por %p44, %p45
      %p48 = scmp.ne.s32.totalorder %s31, %s47
      %p49 = scmp.eq.s32.totalorder %s23, 0
      %p50 = por %p48, %p49
      %s52 = sadd.s32 %s51, 1
      %p55 = scmp.eq.s32.totalorder %s17, 1
      %p56 = scmp.ne.s32.totalorder %s51, %s53
      %p57 = scmp.eq.s32.totalorder %s17, 0
      %p58 = por %p56, %p57
      %p59 = scmp.ne.s32.totalorder %s51, %s53
      %p60 = scmp.eq.s32.totalorder %s22, 1
      %p61 = por %p59, %p60
      %p62 = scmp.ne.s32.totalorder %s53, %s54
      %p63 = scmp.eq.s32.totalorder %s22, 0
      %p64 = por %p62, %p63
      %p65 = scmp.ne.s32.totalorder %s53, %s54
      %p66 = scmp.eq.s32.totalorder %s23, 1
      %p67 = por %p65, %p66
      %p69 = scmp.ne.s32.totalorder %s54, %s68
      %p70 = scmp.eq.s32.totalorder %s23, 0
      %p71 = por %p69, %p70
      %s73 = sadd.s32 %s72, 1
      %p76 = scmp.eq.s32.totalorder %s17, 1
      %p77 = scmp.ne.s32.totalorder %s72, %s74
      %p78 = scmp.eq.s32.totalorder %s17, 0
      %p79 = por %p77, %p78
      %p80 = scmp.ne.s32.totalorder %s72, %s74
      %p81 = scmp.eq.s32.totalorder %s22, 1
      %p82 = por %p80, %p81
      %p83 = scmp.ne.s32.totalorder %s74, %s75
      %p84 = scmp.eq.s32.totalorder %s22, 0
      %p85 = por %p83, %p84
      %p86 = scmp.ne.s32.totalorder %s74, %s75
      %p87 = scmp.eq.s32.totalorder %s23, 1
      %p88 = por %p86, %p87
      %p90 = scmp.ne.s32.totalorder %s75, %s89
      %p91 = scmp.eq.s32.totalorder %s23, 0
      %p92 = por %p90, %p91
      %s94 = sadd.s32 %s93, 1
      %p97 = scmp.eq.s32.totalorder %s17, 1
      %p98 = scmp.ne.s32.totalorder %s93, %s95
      %p99 = scmp.eq.s32.totalorder %s17, 0
      %p100 = por %p98, %p99
      %p101 = scmp.ne.s32.totalorder %s93, %s95
      %p102 = scmp.eq.s32.totalorder %s22, 1
      %p103 = por %p101, %p102
      %p104 = scmp.ne.s32.totalorder %s95, %s96
      %p105 = scmp.eq.s32.totalorder %s22, 0
      %p106 = por %p104, %p105
      %p107 = scmp.ne.s32.totalorder %s95, %s96
      %p108 = scmp.eq.s32.totalorder %s23, 1
      %p109 = por %p107, %p108
      %p111 = scmp.ne.s32.totalorder %s96, %s110
      %p112 = scmp.eq.s32.totalorder %s23, 0
      %p113 = por %p111, %p112
      %s115 = sadd.s32 %s114, 1
      %p118 = scmp.eq.s32.totalorder %s17, 1
      %p119 = scmp.ne.s32.totalorder %s114, %s116
      %p120 = scmp.eq.s32.totalorder %s17, 0
      %p121 = por %p119, %p120
      %p122 = scmp.ne.s32.totalorder %s114, %s116
      %p123 = scmp.eq.s32.totalorder %s22, 1
      %p124 = por %p122, %p123
      %p125 = scmp.ne.s32.totalorder %s116, %s117
      %p126 = scmp.eq.s32.totalorder %s22, 0
      %p127 = por %p125, %p126
      %p128 = scmp.ne.s32.totalorder %s116, %s117
      %p129 = scmp.eq.s32.totalorder %s23, 1
      %p130 = por %p128, %p129
      %p132 = scmp.ne.s32.totalorder %s117, %s131
      %p133 = scmp.eq.s32.totalorder %s23, 0
      %p134 = por %p132, %p133
      %s136 = sadd.s32 %s135, 1
      %p139 = scmp.eq.s32.totalorder %s17, 1
      %p140 = scmp.ne.s32.totalorder %s135, %s137
      %p141 = scmp.eq.s32.totalorder %s17, 0
      %p142 = por %p140, %p141
      %p143 = scmp.ne.s32.totalorder %s135, %s137
      %p144 = scmp.eq.s32.totalorder %s22, 1
      %p145 = por %p143, %p144
      %p146 = scmp.ne.s32.totalorder %s137, %s138
      %p147 = scmp.eq.s32.totalorder %s22, 0
      %p148 = por %p146, %p147
      %p149 = scmp.ne.s32.totalorder %s137, %s138
      %p150 = scmp.eq.s32.totalorder %s23, 1
      %p151 = por %p149, %p150
      %p153 = scmp.ne.s32.totalorder %s138, %s152
      %p154 = scmp.eq.s32.totalorder %s23, 0
      %p155 = por %p153, %p154
      %s157 = sadd.s32 %s156, 1
      %p160 = scmp.eq.s32.totalorder %s17, 1
      %p161 = scmp.ne.s32.totalorder %s156, %s158
      %p162 = scmp.eq.s32.totalorder %s17, 0
      %p163 = por %p161, %p162
      %p164 = scmp.ne.s32.totalorder %s156, %s158
      %p165 = scmp.eq.s32.totalorder %s22, 1
      %p166 = por %p164, %p165
      %p167 = scmp.ne.s32.totalorder %s158, %s159
      %p168 = scmp.eq.s32.totalorder %s22, 0
      %p169 = por %p167, %p168
      %p170 = scmp.ne.s32.totalorder %s158, %s159
      %p171 = scmp.eq.s32.totalorder %s23, 1
      %p172 = por %p170, %p171
      %p174 = scmp.ne.s32.totalorder %s159, %s173
      %p175 = scmp.eq.s32.totalorder %s23, 0
      %p176 = por %p174, %p175
      %s177 = ssub.s32 %s17, %s24
      %p178 = scmp.eq.s32.totalorder %s177, 0
      %s180 = sadd.s32 %s179, 1
      %s181 = scalar_select %p178, %s179, %s180
      %p184 = pneg %p178
      %p185 = scmp.eq.s32.totalorder %s17, 1
      %p186 = por %p184, %p185
      %p187 = scmp.ne.s32.totalorder %s179, %s182
      %p188 = scmp.eq.s32.totalorder %s17, 0
      %p189 = por %p187, %p188
      %p190 = scmp.ne.s32.totalorder %s179, %s182
      %p191 = scmp.eq.s32.totalorder %s22, 1
      %p192 = por %p190, %p191
      %p193 = scmp.ne.s32.totalorder %s182, %s183
      %p194 = scmp.eq.s32.totalorder %s22, 0
      %p195 = por %p193, %p194
      %p196 = scmp.ne.s32.totalorder %s182, %s183
      %p197 = scmp.eq.s32.totalorder %s23, 1
      %p198 = por %p196, %p197
      %p200 = scmp.ne.s32.totalorder %s183, %s199
      %p201 = scmp.eq.s32.totalorder %s23, 0
      %p202 = por %p200, %p201
      %p203 = scmp.le.s32.totalorder 1, %s17
      %p204 = scmp.lt.s32.totalorder %s17, 3
      %p205 = pnand %p203, %p204
      %p206 = pneg %p205
      // Predicated region
      $region9: #{circle_model_v2_forward.1} parent=5 // pred_check
        _
      $region10: #{circle_model_v2_forward.1} parent=5 // pred_check_branch
        %208 = sbr.rel (%p205) target = $region12
      $region11: #{circle_model_v2_forward.1} parent=5 // pred_region
        %s209 = ssub.s32 %s17, 1
        // Predicated region
        $region13: #{circle_model_v2_forward.1} parent=11 // pred_check
          %p210 = pneg %p64
        $region14: #{circle_model_v2_forward.1} parent=11 // pred_check_branch
          %212 = sbr.rel (%p210) target = $region16
        $region15: #{circle_model_v2_forward.1} parent=11 // pred_region
          _
        $region16: #{circle_model_v2_forward.1} parent=11 // pred_fallthru
          _
        // Predicated region
        $region17: #{circle_model_v2_forward.1} parent=11 // pred_check
          %p213 = pneg %p85
        $region18: #{circle_model_v2_forward.1} parent=11 // pred_check_branch
          %215 = sbr.rel (%p213) target = $region20
        $region19: #{circle_model_v2_forward.1} parent=11 // pred_region
          _
        $region20: #{circle_model_v2_forward.1} parent=11 // pred_fallthru
          _
        // Predicated region
        $region21: #{circle_model_v2_forward.1} parent=11 // pred_check
          %p216 = pneg %p106
        $region22: #{circle_model_v2_forward.1} parent=11 // pred_check_branch
          %218 = sbr.rel (%p216) target = $region24
        $region23: #{circle_model_v2_forward.1} parent=11 // pred_region
          _
        $region24: #{circle_model_v2_forward.1} parent=11 // pred_fallthru
          _
        // Predicated region
        $region25: #{circle_model_v2_forward.1} parent=11 // pred_check
          %p219 = pneg %p127
        $region26: #{circle_model_v2_forward.1} parent=11 // pred_check_branch
          %221 = sbr.rel (%p219) target = $region28
        $region27: #{circle_model_v2_forward.1} parent=11 // pred_region
          _
        $region28: #{circle_model_v2_forward.1} parent=11 // pred_fallthru
          _
        // Predicated region
        $region29: #{circle_model_v2_forward.1} parent=11 // pred_check
          %p222 = pneg %p148
        $region30: #{circle_model_v2_forward.1} parent=11 // pred_check_branch
          %224 = sbr.rel (%p222) target = $region32
        $region31: #{circle_model_v2_forward.1} parent=11 // pred_region
          _
        $region32: #{circle_model_v2_forward.1} parent=11 // pred_fallthru
          _
        // Predicated region
        $region33: #{circle_model_v2_forward.1} parent=11 // pred_check
          %p225 = pneg %p169
        $region34: #{circle_model_v2_forward.1} parent=11 // pred_check_branch
          %227 = sbr.rel (%p225) target = $region36
        $region35: #{circle_model_v2_forward.1} parent=11 // pred_region
          _
        $region36: #{circle_model_v2_forward.1} parent=11 // pred_fallthru
          _
      $region12: #{circle_model_v2_forward.1} parent=5 // pred_fallthru
        _
      %p228 = scmp.lt.s32.totalorder %s17, 2
      // Predicated region
      $region37: #{circle_model_v2_forward.1} parent=5 // pred_check
        %p229 = pneg %p228
      $region38: #{circle_model_v2_forward.1} parent=5 // pred_check_branch
        %231 = sbr.rel (%p229) target = $region40
      $region39: #{circle_model_v2_forward.1} parent=5 // pred_region
        // Predicated region
        $region41: #{circle_model_v2_forward.1} parent=39 // pred_check
          %p232 = pneg %p37
        $region42: #{circle_model_v2_forward.1} parent=39 // pred_check_branch
          %234 = sbr.rel (%p232) target = $region44
        $region43: #{circle_model_v2_forward.1} parent=39 // pred_region
          %s235 = smul.u32 2, %s17
          %p236 = scmp.lt.s32.totalorder %s235, 3
          %s237 = scalar_select %p236, %s235, 3
          %s238 = smul.addr %s237, 2
          %s239 = scalar_lea.vmem %s0, %s238
          %s240 = smul.u32 2, %s17
        $region44: #{circle_model_v2_forward.1} parent=39 // pred_fallthru
          _
      $region40: #{circle_model_v2_forward.1} parent=5 // pred_fallthru
        _
      %p241 = scmp.le.s32.totalorder 1, %s17
      %p242 = scmp.lt.s32.totalorder %s17, 3
      %p243 = pnand %p241, %p242
      %p244 = pneg %p243
      // Predicated region
      $region45: #{circle_model_v2_forward.1} parent=5 // pred_check
        _
      $region46: #{circle_model_v2_forward.1} parent=5 // pred_check_branch
        %246 = sbr.rel (%p243) target = $region48
      $region47: #{circle_model_v2_forward.1} parent=5 // pred_region
        %s247 = ssub.s32 %s17, 1
        %s248 = smul.u32 2, %s22
        %p249 = scmp.lt.s32.totalorder %s248, 3
        %s250 = scalar_select %p249, %s248, 3
        %s251 = smul.addr %s250, 2
        %s252 = scalar_lea.vmem %s0, %s251
        %p253 = pneg %p43
        %p254 = pneg %p40
        %p255 = pneg %p64
        %p256 = pneg %p61
        %p257 = pneg %p85
        %p258 = pneg %p82
        %p259 = pneg %p106
        %p260 = pneg %p103
        %p261 = pneg %p127
        %p262 = pneg %p124
        %p263 = pneg %p148
        %p264 = pneg %p145
        %p265 = pneg %p169
        %p266 = pneg %p166
        %p267 = pneg %p195
        %p268 = pneg %p192
        %s269 = sand.u32 %s182, 1
        %s270 = scalar_lea.sflag [#allocation4], %s269
        %s271 = sand.u32 %s182, 1
        %s272 = smul.addr %s271, 2
        %s273 = scalar_lea.vmem [#allocation3], %s272
        %s274 = smul.u32 2, %s22
        %p275 = scmp.lt.s32.totalorder %s274, 3
        %s276 = scalar_select %p275, %s274, 3
        %s277 = smul.addr %s276, 2
        %s278 = scalar_lea.vmem %s0, %s277
        %s279 = smul.u32 2, %s22
        %s280 = smul.u32 2, %s22
        %v281 = vld [vmem:[%s278] ss:$2 sm:$0x3]
        %s282 = scalar_lea.vmem %s278, 1
        %v283 = vld [vmem:[%s282] ss:$2 sm:$0x3]
        %v284 = vld [vmem:[%s1] sm:$0xff]
        %v285 = vld [vmem:[%s1 + $0x8] sm:$0xff]
        %287 = vset.pattern.permute.xlu0 0
        %288 = vperm.xlu0 %287, %v284
        %v289 = vpop.permute.xlu0 %288
        %292 = vset.pattern.permute.xlu0 0
        %293 = vperm.xlu0 %292, %v285
        %v294 = vpop.permute.xlu0 %293
        %v297 = vlaneseq
        %v298 = vshrl.u32 %v297, 7
        %v299 = vsub.s32 0, %v298
        %v300 = vrot.slane %v281, %v299
        %v301 = vlaneseq
        %v302 = vshrl.u32 %v301, 7
        %v303 = vsub.s32 1, %v302
        %v304 = vrot.slane %v281, %v303
        %v307 = vmul.f32 %v289, %v300
        %v308 = vmul.f32 %v289, %v304
        %v309 = vmul.f32 %v294, %v300
        %v310 = vmul.f32 %v294, %v304
        %311 = vset.pattern.permute.xlu0 1
        %312 = vperm.xlu0 %311, %v284
        %v313 = vpop.permute.xlu0 %312
        %315 = vset.pattern.permute.xlu0 1
        %316 = vperm.xlu0 %315, %v285
        %v317 = vpop.permute.xlu0 %316
        %v320 = vlaneseq
        %v321 = vshrl.u32 %v320, 7
        %v322 = vsub.s32 0, %v321
        %v323 = vrot.slane %v283, %v322
        %v324 = vlaneseq
        %v325 = vshrl.u32 %v324, 7
        %v326 = vsub.s32 1, %v325
        %v327 = vrot.slane %v283, %v326
        %v330 = vmul.f32 %v313, %v323
        %v331 = vmul.f32 %v313, %v327
        %v332 = vmul.f32 %v317, %v323
        %v333 = vmul.f32 %v317, %v327
        %v334 = vadd.f32 %v307, %v330
        %v335 = vadd.f32 %v308, %v331
        %v336 = vadd.f32 %v309, %v332
        %v337 = vadd.f32 %v310, %v333
        %v338 = vld [vmem:[%s2] sm:$0xff]
        %v339 = vld [vmem:[%s2 + $0x8] sm:$0xff]
        %341 = vset.pattern.permute.xlu0 0
        %342 = vperm.xlu0 %341, %v338
        %v343 = vpop.permute.xlu0 %342
        %346 = vset.pattern.permute.xlu0 0
        %347 = vperm.xlu0 %346, %v339
        %v348 = vpop.permute.xlu0 %347
        %v350 = vadd.f32 %v334, %v343
        %v351 = vadd.f32 %v335, %v343
        %v352 = vadd.f32 %v336, %v348
        %v353 = vadd.f32 %v337, %v348
        %v354 = vmax.f32 %v350, 0.0
        %v355 = vmax.f32 %v351, 0.0
        %v356 = vmax.f32 %v352, 0.0
        %v357 = vmax.f32 %v353, 0.0
        %v358 = vld [vmem:[%s3] sm:$0xff]
        %v359 = vld [vmem:[%s3 + $0x8] sm:$0xff]
        %361 = vset.pattern.permute.xlu0 0
        %362 = vperm.xlu0 %361, %v358
        %v363 = vpop.permute.xlu0 %362
        %366 = vset.pattern.permute.xlu0 0
        %367 = vperm.xlu0 %366, %v359
        %v368 = vpop.permute.xlu0 %367
        %v370 = vlaneseq
        %v371 = vshrl.u32 %v370, 7
        %v372 = vsub.s32 0, %v371
        %v373 = vrot.slane %v354, %v372
        %v374 = vlaneseq
        %v375 = vshrl.u32 %v374, 7
        %v376 = vsub.s32 0, %v375
        %v377 = vrot.slane %v355, %v376
        %v378 = vmul.f32 %v363, %v373
        %v379 = vmul.f32 %v363, %v377
        %v380 = vmul.f32 %v368, %v373
        %v381 = vmul.f32 %v368, %v377
        %382 = vset.pattern.permute.xlu0 1
        %383 = vperm.xlu0 %382, %v358
        %v384 = vpop.permute.xlu0 %383
        %386 = vset.pattern.permute.xlu0 1
        %387 = vperm.xlu0 %386, %v359
        %v388 = vpop.permute.xlu0 %387
        %v390 = vlaneseq
        %v391 = vshrl.u32 %v390, 7
        %v392 = vsub.s32 1, %v391
        %v393 = vrot.slane %v354, %v392
        %v394 = vlaneseq
        %v395 = vshrl.u32 %v394, 7
        %v396 = vsub.s32 1, %v395
        %v397 = vrot.slane %v355, %v396
        %v398 = vmul.f32 %v384, %v393
        %v399 = vmul.f32 %v384, %v397
        %v400 = vmul.f32 %v388, %v393
        %v401 = vmul.f32 %v388, %v397
        %v402 = vadd.f32 %v378, %v398
        %v403 = vadd.f32 %v379, %v399
        %v404 = vadd.f32 %v380, %v400
        %v405 = vadd.f32 %v381, %v401
        %406 = vset.pattern.permute.xlu0 2
        %407 = vperm.xlu0 %406, %v358
        %v408 = vpop.permute.xlu0 %407
        %410 = vset.pattern.permute.xlu0 2
        %411 = vperm.xlu0 %410, %v359
        %v412 = vpop.permute.xlu0 %411
        %v414 = vlaneseq
        %v415 = vshrl.u32 %v414, 7
        %v416 = vsub.s32 2, %v415
        %v417 = vrot.slane %v354, %v416
        %v418 = vlaneseq
        %v419 = vshrl.u32 %v418, 7
        %v420 = vsub.s32 2, %v419
        %v421 = vrot.slane %v355, %v420
        %v422 = vmul.f32 %v408, %v417
        %v423 = vmul.f32 %v408, %v421
        %v424 = vmul.f32 %v412, %v417
        %v425 = vmul.f32 %v412, %v421
        %v426 = vadd.f32 %v402, %v422
        %v427 = vadd.f32 %v403, %v423
        %v428 = vadd.f32 %v404, %v424
        %v429 = vadd.f32 %v405, %v425
        %430 = vset.pattern.permute.xlu0 3
        %431 = vperm.xlu0 %430, %v358
        %v432 = vpop.permute.xlu0 %431
        %434 = vset.pattern.permute.xlu0 3
        %435 = vperm.xlu0 %434, %v359
        %v436 = vpop.permute.xlu0 %435
        %v438 = vlaneseq
        %v439 = vshrl.u32 %v438, 7
        %v440 = vsub.s32 3, %v439
        %v441 = vrot.slane %v354, %v440
        %v442 = vlaneseq
        %v443 = vshrl.u32 %v442, 7
        %v444 = vsub.s32 3, %v443
        %v445 = vrot.slane %v355, %v444
        %v446 = vmul.f32 %v432, %v441
        %v447 = vmul.f32 %v432, %v445
        %v448 = vmul.f32 %v436, %v441
        %v449 = vmul.f32 %v436, %v445
        %v450 = vadd.f32 %v426, %v446
        %v451 = vadd.f32 %v427, %v447
        %v452 = vadd.f32 %v428, %v448
        %v453 = vadd.f32 %v429, %v449
        %454 = vset.pattern.permute.xlu0 4
        %455 = vperm.xlu0 %454, %v358
        %v456 = vpop.permute.xlu0 %455
        %458 = vset.pattern.permute.xlu0 4
        %459 = vperm.xlu0 %458, %v359
        %v460 = vpop.permute.xlu0 %459
        %v462 = vlaneseq
        %v463 = vshrl.u32 %v462, 7
        %v464 = vsub.s32 4, %v463
        %v465 = vrot.slane %v354, %v464
        %v466 = vlaneseq
        %v467 = vshrl.u32 %v466, 7
        %v468 = vsub.s32 4, %v467
        %v469 = vrot.slane %v355, %v468
        %v470 = vmul.f32 %v456, %v465
        %v471 = vmul.f32 %v456, %v469
        %v472 = vmul.f32 %v460, %v465
        %v473 = vmul.f32 %v460, %v469
        %v474 = vadd.f32 %v450, %v470
        %v475 = vadd.f32 %v451, %v471
        %v476 = vadd.f32 %v452, %v472
        %v477 = vadd.f32 %v453, %v473
        %478 = vset.pattern.permute.xlu0 5
        %479 = vperm.xlu0 %478, %v358
        %v480 = vpop.permute.xlu0 %479
        %482 = vset.pattern.permute.xlu0 5
        %483 = vperm.xlu0 %482, %v359
        %v484 = vpop.permute.xlu0 %483
        %v486 = vlaneseq
        %v487 = vshrl.u32 %v486, 7
        %v488 = vsub.s32 5, %v487
        %v489 = vrot.slane %v354, %v488
        %v490 = vlaneseq
        %v491 = vshrl.u32 %v490, 7
        %v492 = vsub.s32 5, %v491
        %v493 = vrot.slane %v355, %v492
        %v494 = vmul.f32 %v480, %v489
        %v495 = vmul.f32 %v480, %v493
        %v496 = vmul.f32 %v484, %v489
        %v497 = vmul.f32 %v484, %v493
        %v498 = vadd.f32 %v474, %v494
        %v499 = vadd.f32 %v475, %v495
        %v500 = vadd.f32 %v476, %v496
        %v501 = vadd.f32 %v477, %v497
        %502 = vset.pattern.permute.xlu0 6
        %503 = vperm.xlu0 %502, %v358
        %v504 = vpop.permute.xlu0 %503
        %506 = vset.pattern.permute.xlu0 6
        %507 = vperm.xlu0 %506, %v359
        %v508 = vpop.permute.xlu0 %507
        %v510 = vlaneseq
        %v511 = vshrl.u32 %v510, 7
        %v512 = vsub.s32 6, %v511
        %v513 = vrot.slane %v354, %v512
        %v514 = vlaneseq
        %v515 = vshrl.u32 %v514, 7
        %v516 = vsub.s32 6, %v515
        %v517 = vrot.slane %v355, %v516
        %v518 = vmul.f32 %v504, %v513
        %v519 = vmul.f32 %v504, %v517
        %v520 = vmul.f32 %v508, %v513
        %v521 = vmul.f32 %v508, %v517
        %v522 = vadd.f32 %v498, %v518
        %v523 = vadd.f32 %v499, %v519
        %v524 = vadd.f32 %v500, %v520
        %v525 = vadd.f32 %v501, %v521
        %526 = vset.pattern.permute.xlu0 7
        %527 = vperm.xlu0 %526, %v358
        %v528 = vpop.permute.xlu0 %527
        %530 = vset.pattern.permute.xlu0 7
        %531 = vperm.xlu0 %530, %v359
        %v532 = vpop.permute.xlu0 %531
        %v534 = vlaneseq
        %v535 = vshrl.u32 %v534, 7
        %v536 = vsub.s32 7, %v535
        %v537 = vrot.slane %v354, %v536
        %v538 = vlaneseq
        %v539 = vshrl.u32 %v538, 7
        %v540 = vsub.s32 7, %v539
        %v541 = vrot.slane %v355, %v540
        %v542 = vmul.f32 %v528, %v537
        %v543 = vmul.f32 %v528, %v541
        %v544 = vmul.f32 %v532, %v537
        %v545 = vmul.f32 %v532, %v541
        %v546 = vadd.f32 %v522, %v542
        %v547 = vadd.f32 %v523, %v543
        %v548 = vadd.f32 %v524, %v544
        %v549 = vadd.f32 %v525, %v545
        %550 = vset.pattern.permute.xlu0 8
        %551 = vperm.xlu0 %550, %v358
        %v552 = vpop.permute.xlu0 %551
        %554 = vset.pattern.permute.xlu0 8
        %555 = vperm.xlu0 %554, %v359
        %v556 = vpop.permute.xlu0 %555
        %v558 = vlaneseq
        %v559 = vshrl.u32 %v558, 7
        %v560 = vsub.s32 0, %v559
        %v561 = vrot.slane %v356, %v560
        %v562 = vlaneseq
        %v563 = vshrl.u32 %v562, 7
        %v564 = vsub.s32 0, %v563
        %v565 = vrot.slane %v357, %v564
        %v566 = vmul.f32 %v552, %v561
        %v567 = vmul.f32 %v552, %v565
        %v568 = vmul.f32 %v556, %v561
        %v569 = vmul.f32 %v556, %v565
        %v570 = vadd.f32 %v546, %v566
        %v571 = vadd.f32 %v547, %v567
        %v572 = vadd.f32 %v548, %v568
        %v573 = vadd.f32 %v549, %v569
        %574 = vset.pattern.permute.xlu0 9
        %575 = vperm.xlu0 %574, %v358
        %v576 = vpop.permute.xlu0 %575
        %578 = vset.pattern.permute.xlu0 9
        %579 = vperm.xlu0 %578, %v359
        %v580 = vpop.permute.xlu0 %579
        %v582 = vlaneseq
        %v583 = vshrl.u32 %v582, 7
        %v584 = vsub.s32 1, %v583
        %v585 = vrot.slane %v356, %v584
        %v586 = vlaneseq
        %v587 = vshrl.u32 %v586, 7
        %v588 = vsub.s32 1, %v587
        %v589 = vrot.slane %v357, %v588
        %v590 = vmul.f32 %v576, %v585
        %v591 = vmul.f32 %v576, %v589
        %v592 = vmul.f32 %v580, %v585
        %v593 = vmul.f32 %v580, %v589
        %v594 = vadd.f32 %v570, %v590
        %v595 = vadd.f32 %v571, %v591
        %v596 = vadd.f32 %v572, %v592
        %v597 = vadd.f32 %v573, %v593
        %v598 = vld [vmem:[%s4] sm:$0xff]
        %v599 = vld [vmem:[%s4 + $0x8] sm:$0xff]
        %601 = vset.pattern.permute.xlu0 0
        %602 = vperm.xlu0 %601, %v598
        %v603 = vpop.permute.xlu0 %602
        %606 = vset.pattern.permute.xlu0 0
        %607 = vperm.xlu0 %606, %v599
        %v608 = vpop.permute.xlu0 %607
        %v610 = vadd.f32 %v594, %v603
        %v611 = vadd.f32 %v595, %v603
        %v612 = vadd.f32 %v596, %v608
        %v613 = vadd.f32 %v597, %v608
        %v614 = vmax.f32 %v610, 0.0
        %v615 = vmax.f32 %v611, 0.0
        %v616 = vmax.f32 %v612, 0.0
        %v617 = vmax.f32 %v613, 0.0
        %v618 = vld [vmem:[%s5] sm:$0xff]
        %v619 = vld [vmem:[%s5 + $0x8] sm:$0xff]
        %621 = vset.pattern.permute.xlu0 0
        %622 = vperm.xlu0 %621, %v618
        %v623 = vpop.permute.xlu0 %622
        %626 = vset.pattern.permute.xlu0 0
        %627 = vperm.xlu0 %626, %v619
        %v628 = vpop.permute.xlu0 %627
        %v630 = vmul.f32 %v614, %v623
        %v631 = vmul.f32 %v615, %v623
        %v632 = vmul.f32 %v616, %v628
        %v633 = vmul.f32 %v617, %v628
        %v634 = vadd.f32 %v630, %v632
        %v635 = vrot.slane %v634, 4
        %v636 = vadd.f32 %v634, %v635
        %v637 = vrot.slane %v636, 2
        %v638 = vadd.f32 %v636, %v637
        %v639 = vrot.slane %v638, 1
        %v640 = vadd.f32 %v638, %v639
        %v641 = vadd.f32 %v631, %v633
        %v642 = vrot.slane %v641, 4
        %v643 = vadd.f32 %v641, %v642
        %v644 = vrot.slane %v643, 2
        %v645 = vadd.f32 %v643, %v644
        %v646 = vrot.slane %v645, 1
        %v647 = vadd.f32 %v645, %v646
        %s648 = sld [smem:[#allocation2]]
        %v649 = vstv %s648
        %v650 = vadd.f32 %v640, %v649
        %v651 = vadd.f32 %v647, %v649
        %v654 = vcombine.low %v650, %v651
        %v656 = vunpack.c.l.s4 1966171168
        %v657 = vunpack.c.0.s8 %v656
        %v658 = vlaneseq
        %v659 = vshrl.u32 %v658, 7
        %v660 = vsub.s32 %v657, %v659
        %v661 = vrot.slane %v654, %v660
        %v663 = vunpack.c.l.s4 1966171168
        %v664 = vunpack.c.0.s8 %v663
        %v665 = vlaneseq
        %v666 = vshrl.u32 %v665, 7
        %v667 = vsub.s32 %v664, %v666
        %v668 = vrot.slane %v661, %v667
        %v670 = vlaneseq
        %vm671 = vcmp.ge.s32.totalorder %v670, 0
        %vm672 = vcmp.lt.s32.totalorder %v670, 256
        %vm673 = vmand %vm671, %vm672
        %674 = vst.msk [vmem:[%s273] sm:$0x3] %vm673, %v668
        %s675 = sand.u32 %s182, 1
        %s676 = scalar_lea.sflag [#allocation4], %s675
        %s677 = sand.u32 %s182, 1
        %s678 = smul.addr %s677, 2
        %s679 = scalar_lea.vmem [#allocation3], %s678
        // Predicated region
        $region49: #{circle_model_v2_forward.1} parent=47 // pred_check
          %p680 = pneg %p192
        $region50: #{circle_model_v2_forward.1} parent=47 // pred_check_branch
          %682 = sbr.rel (%p680) target = $region52
        $region51: #{circle_model_v2_forward.1} parent=47 // pred_region
          %s683 = smul.u32 2, %s22
          %s685 = ssub.s32 32, 32
          %686 = vsyncadd %s676, %s685
          %s687 = smul.addr %s683, 16
          %s688 = scalar_lea.hbm %s7, %s687
          %s690 = sshll.u32 %s679, 4
          %s691 = int_to_ptr.vmem [resolvable:$true] %s690
          %693 = dma.vmem_to_hbm [thread:$0]  %s691, 32, %s688, %s676
        $region52: #{circle_model_v2_forward.1} parent=47 // pred_fallthru
          _
      $region48: #{circle_model_v2_forward.1} parent=5 // pred_fallthru
        _
      %p694 = scmp.le.s32.totalorder 2, %s17
      // Predicated region
      $region53: #{circle_model_v2_forward.1} parent=5 // pred_check
        %p695 = pneg %p694
      $region54: #{circle_model_v2_forward.1} parent=5 // pred_check_branch
        %697 = sbr.rel (%p695) target = $region56
      $region55: #{circle_model_v2_forward.1} parent=5 // pred_region
        %s698 = ssub.s32 %s17, 2
        // Predicated region
        $region57: #{circle_model_v2_forward.1} parent=55 // pred_check
          %p699 = pneg %p198
        $region58: #{circle_model_v2_forward.1} parent=55 // pred_check_branch
          %701 = sbr.rel (%p699) target = $region60
        $region59: #{circle_model_v2_forward.1} parent=55 // pred_region
          %s702 = sand.u32 %s183, 1
          %s703 = scalar_lea.sflag [#allocation4], %s702
          %s704 = sand.u32 %s183, 1
          %s705 = smul.addr %s704, 2
          %s706 = scalar_lea.vmem [#allocation3], %s705
          %707 = dma.done %s703, 32
        $region60: #{circle_model_v2_forward.1} parent=55 // pred_fallthru
          _
      $region56: #{circle_model_v2_forward.1} parent=5 // pred_fallthru
        _
    $region6: #{circle_model_v2_forward.1} parent=1 // loop_footer
      %s21 = sadd.s32 1, %s17
    $region7: #{circle_model_v2_forward.1} parent=1 // loop_footer_branch
      %16 = sbr.rel target = $region3
    $region8: #{circle_model_v2_forward.1} parent=1 // loop_exit
      _
    %708 = vsyncpa [#allocation4], 1
    %s709 = scalar_lea.sflag [#allocation4], 1
    %710 = vsyncpa %s709, 1

</llo_original>
